<compile_context>
chip_gen: v7x
topology: tpu7x:2x2x1
jax: 0.10.0
libtpu: 0.0.40
codegen_flags: <defaults>
</compile_context>

<pallas_src>
import jax
import jax.numpy as jnp
from jax.experimental import pallas as pl
from jax.experimental.pallas import tpu as pltpu


def _round_up(x: int, m: int) -> int:
    return ((x + m - 1) // m) * m


def _regression_task_kernel(
    x_ref,        # (TILE_N, D_pad) f32
    w1_ref,       # (D_pad, H_pad)  f32   (resident)
    b1_ref,       # (1, H_pad)      f32   (resident)
    w2_ref,       # (H_pad, T_pad)  f32   (resident)
    b2_ref,       # (1, T_pad)      f32   (resident)
    tgt_ref,      # (TILE_N, T_pad) f32   raw targets, padding is NaN
    mean_ref,     # (1, T_pad)      f32   (resident)
    inv_std_ref,  # (1, T_pad)      f32   (resident)
    preds_ref,    # out: (TILE_N, T_pad) f32
    sse_ref,      # out: (1, 8, 128)     f32  per-tile partial sum of sq. error
):
    x = x_ref[...]

    # --- Dense (salt.models.Dense): Linear -> ReLU -> Linear on the MXU ---
    h = jnp.dot(x, w1_ref[...], preferred_element_type=jnp.float32) + b1_ref[...]
    h = jnp.maximum(h, 0.0)
    preds = jnp.dot(h, w2_ref[...], preferred_element_type=jnp.float32) + b2_ref[...]
    preds_ref[...] = preds  # lane-dense (T padded to a multiple of 128)

    # --- get_targets: norm_params scaling (multiply by precomputed 1/std) ---
    t = (tgt_ref[...] - mean_ref[...]) * inv_std_ref[...]

    # --- nan_loss: mask NaN targets (incl. padding), squared error, partial sum ---
    invalid = jnp.isnan(t)
    diff = jnp.where(invalid, 0.0, preds - t)  # masked lanes contribute exactly 0
    sse = jnp.sum(diff * diff)
    # TODO(synk): the PyTorch code raises if the loss itself is NaN; no in-kernel raise.
    sse_ref[...] = jnp.full((1, 8, 128), sse, dtype=jnp.float32)


def regression_task_forward(
    x, params, raw_targets, norm_mean, norm_std, task_weight, block_rows: int = 512
):
    """Runs the RegressionTask forward pass. Returns (preds, loss)."""
    f32 = jnp.float32
    n, d_in = x.shape
    hidden = params["w1"].shape[1]
    t_dim = params["w2"].shape[1]

    # Pad feature dims to MXU/lane friendly sizes; tile the batch dim.
    d_pad = _round_up(d_in, 128)
    h_pad = _round_up(hidden, 128)
    t_pad = _round_up(t_dim, 128)
    tile_n = min(block_rows, _round_up(n, 8))
    n_pad = _round_up(n, tile_n)
    grid = n_pad // tile_n

    # One-time padding in the wrapper (zeros for activations/weights,
    # NaN for target padding so nan_loss masks it out automatically).
    x_p = jnp.zeros((n_pad, d_pad), f32).at[:n, :d_in].set(x.astype(f32))
    w1_p = jnp.zeros((d_pad, h_pad), f32).at[:d_in, :hidden].set(params["w1"].astype(f32))
    b1_p = jnp.zeros((1, h_pad), f32).at[:, :hidden].set(params["b1"].astype(f32))
    w2_p = jnp.zeros((h_pad, t_pad), f32).at[:hidden, :t_dim].set(params["w2"].astype(f32))
    b2_p = jnp.zeros((1, t_pad), f32).at[:, :t_dim].set(params["b2"].astype(f32))
    tgt_p = jnp.full((n_pad, t_pad), jnp.nan, f32).at[:n, :t_dim].set(
        raw_targets.astype(f32)
    )
    mean_p = jnp.zeros((1, t_pad), f32).at[:, :t_dim].set(norm_mean.astype(f32))
    inv_std_p = jnp.zeros((1, t_pad), f32).at[:, :t_dim].set(
        (1.0 / norm_std).astype(f32)
    )

    def resident(shape):
        return pl.BlockSpec(shape, lambda i: (0, 0))

    flops = 2 * n_pad * (d_pad * h_pad + h_pad * t_pad)
    bytes_accessed = 4 * (
        x_p.size + w1_p.size + b1_p.size + w2_p.size + b2_p.size
        + tgt_p.size + mean_p.size + inv_std_p.size
        + n_pad * t_pad + grid * 8 * 128
    )

    preds_pad, partial_sse = pl.pallas_call(
        _regression_task_kernel,
        out_shape=(
            jax.ShapeDtypeStruct((n_pad, t_pad), f32),
            jax.ShapeDtypeStruct((grid, 8, 128), f32),
        ),
        grid=(grid,),
        in_specs=[
            pl.BlockSpec((tile_n, d_pad), lambda i: (i, 0)),   # x tile
            resident((d_pad, h_pad)),                          # w1
            resident((1, h_pad)),                              # b1
            resident((h_pad, t_pad)),                          # w2
            resident((1, t_pad)),                              # b2
            pl.BlockSpec((tile_n, t_pad), lambda i: (i, 0)),   # targets tile
            resident((1, t_pad)),                              # mean
            resident((1, t_pad)),                              # 1/std
        ],
        out_specs=(
            pl.BlockSpec((tile_n, t_pad), lambda i: (i, 0)),   # preds tile
            pl.BlockSpec((1, 8, 128), lambda i: (i, 0, 0)),    # per-tile SSE
        ),
        compiler_params=pltpu.CompilerParams(
            dimension_semantics=("parallel",),
        ),
        cost_estimate=pl.CostEstimate(
            flops=flops, transcendentals=0, bytes_accessed=bytes_accessed
        ),
    )(x_p, w1_p, b1_p, w2_p, b2_p, tgt_p, mean_p, inv_std_p)

    preds = preds_pad[:n, :t_dim]
    # Final tiny reduction in JAX; normalize by the TRUE element count N*T
    # (padded rows/lanes contributed exactly 0 to the partial sums).
    loss = partial_sse[:, 0, 0].sum() / (n * t_dim) * task_weight
    return preds, loss


def _reference(x, params, raw_targets, norm_mean, norm_std, weight):
    """Plain-JAX reference of the same semantics."""
    h_ref = jnp.maximum(x @ params["w1"] + params["b1"], 0.0)
    preds_ref = h_ref @ params["w2"] + params["b2"]
    t_ref = (raw_targets - norm_mean) / norm_std
    inv = jnp.isnan(t_ref)
    p_m = jnp.where(inv, 0.0, preds_ref)
    t_m = jnp.where(inv, 0.0, t_ref)
    loss_ref = jnp.mean((p_m - t_m) ** 2) * weight
    return preds_ref, loss_ref


if __name__ == "__main__":
    # Small shapes consistent with the module: global-object-level regression.
    N = 8          # batch (number of jets)
    D_IN = 32      # dense_config input_size
    HIDDEN = 64    # dense_config hidden layer
    T = 2          # number of regression targets (== net.output_size)
    WEIGHT = 0.7   # task weight in the overall loss

    key = jax.random.PRNGKey(0)
    kx, kw1, kb1, kw2, kb2, kt = jax.random.split(key, 6)

    x = jax.random.normal(kx, (N, D_IN), dtype=jnp.float32)

    # Deterministic synthetic Dense parameters (not a checkpoint load).
    params = {
        "w1": jax.random.normal(kw1, (D_IN, HIDDEN), dtype=jnp.float32) * 0.1,
        "b1": jax.random.normal(kb1, (1, HIDDEN), dtype=jnp.float32) * 0.01,
        "w2": jax.random.normal(kw2, (HIDDEN, T), dtype=jnp.float32) * 0.1,
        "b2": jax.random.normal(kb2, (1, T), dtype=jnp.float32) * 0.01,
    }

    # Raw regression targets (stacked along dim 1), with a NaN to exercise nan_loss.
    raw_targets = jax.random.normal(kt, (N, T), dtype=jnp.float32) * 2.0 + 1.0
    raw_targets = raw_targets.at[3, 1].set(jnp.nan)

    # norm_params (mean/std per target).
    norm_mean = jnp.array([[1.0, -0.5]], dtype=jnp.float32)
    norm_std = jnp.array([[2.0, 0.5]], dtype=jnp.float32)

    # --- test 1: single-tile case ---
    preds, loss = regression_task_forward(
        x, params, raw_targets, norm_mean, norm_std, WEIGHT
    )
    jax.block_until_ready((preds, loss))
    preds_ref, loss_ref = _reference(x, params, raw_targets, norm_mean, norm_std, WEIGHT)
    assert jnp.allclose(preds, preds_ref, atol=1e-5, rtol=1e-5)
    assert jnp.allclose(loss, loss_ref, atol=1e-5, rtol=1e-5)

    # --- test 2: multi-tile grid with a ragged last tile (N=300, tile=128) ---
    N2 = 300
    kx2, kt2 = jax.random.split(jax.random.PRNGKey(1), 2)
    x2 = jax.random.normal(kx2, (N2, D_IN), dtype=jnp.float32)
    raw_targets2 = jax.random.normal(kt2, (N2, T), dtype=jnp.float32) * 2.0 + 1.0
    raw_targets2 = raw_targets2.at[17, 0].set(jnp.nan)
    preds2, loss2 = regression_task_forward(
        x2, params, raw_targets2, norm_mean, norm_std, WEIGHT, block_rows=128
    )
    jax.block_until_ready((preds2, loss2))
    preds2_ref, loss2_ref = _reference(
        x2, params, raw_targets2, norm_mean, norm_std, WEIGHT
    )
    assert jnp.allclose(preds2, preds2_ref, atol=1e-5, rtol=1e-5)
    assert jnp.allclose(loss2, loss2_ref, atol=1e-5, rtol=1e-5)

    print("KERNEL_OK")
</pallas_src>

<mosaic_0001>
module attributes {stable_mosaic.version = 11 : i64} {
  func.func @_regression_task_kernel(%arg0: i32, %arg1: memref<8x128xf32, #tpu.memory_space<vmem>>, %arg2: memref<128x128xf32, #tpu.memory_space<vmem>>, %arg3: memref<1x128xf32, #tpu.memory_space<vmem>>, %arg4: memref<128x128xf32, #tpu.memory_space<vmem>>, %arg5: memref<1x128xf32, #tpu.memory_space<vmem>>, %arg6: memref<8x128xf32, #tpu.memory_space<vmem>>, %arg7: memref<1x128xf32, #tpu.memory_space<vmem>>, %arg8: memref<1x128xf32, #tpu.memory_space<vmem>>, %arg9: memref<8x128xf32, #tpu.memory_space<vmem>>, %arg10: memref<1x8x128xf32, #tpu.memory_space<vmem>>) attributes {dimension_semantics = [#tpu.dimension_semantics<parallel>], iteration_bounds = array<i64: 1>, scalar_prefetch = 0 : i64, scratch_operands = 0 : i64, tpu.core_type = #tpu.core_type<tc>, window_params = [{transform_indices = @transform_0, window_bounds = array<i64: 8, 128>}, {pipeline_mode = #tpu.pipeline_mode<synchronous>, transform_indices = @transform_1, window_bounds = array<i64: 128, 128>}, {pipeline_mode = #tpu.pipeline_mode<synchronous>, transform_indices = @transform_2, window_bounds = array<i64: 1, 128>}, {pipeline_mode = #tpu.pipeline_mode<synchronous>, transform_indices = @transform_3, window_bounds = array<i64: 128, 128>}, {pipeline_mode = #tpu.pipeline_mode<synchronous>, transform_indices = @transform_4, window_bounds = array<i64: 1, 128>}, {transform_indices = @transform_5, window_bounds = array<i64: 8, 128>}, {pipeline_mode = #tpu.pipeline_mode<synchronous>, transform_indices = @transform_6, window_bounds = array<i64: 1, 128>}, {pipeline_mode = #tpu.pipeline_mode<synchronous>, transform_indices = @transform_7, window_bounds = array<i64: 1, 128>}, {transform_indices = @transform_8, window_bounds = array<i64: 8, 128>}, {transform_indices = @transform_9, window_bounds = array<i64: 1, 8, 128>}]} {
    %c0 = arith.constant 0 : index
    %c0_0 = arith.constant 0 : index
    %0 = vector.load %arg1[%c0, %c0_0] : memref<8x128xf32, #tpu.memory_space<vmem>>, vector<8x128xf32>
    %c0_1 = arith.constant 0 : index
    %c0_2 = arith.constant 0 : index
    %1 = vector.load %arg2[%c0_1, %c0_2] : memref<128x128xf32, #tpu.memory_space<vmem>>, vector<128x128xf32>
    %cst = arith.constant dense<0.000000e+00> : vector<8x128xf32>
    %2 = tpu.matmul %0, %1, %cst {dimension_numbers = #tpu.dot_dimension_numbers<[1], [0], [0], [1], [0, 0, 1, 1], [], []>} : vector<8x128xf32>, vector<128x128xf32>, vector<8x128xf32> -> vector<8x128xf32>
    %c0_3 = arith.constant 0 : index
    %c0_4 = arith.constant 0 : index
    %3 = vector.load %arg3[%c0_3, %c0_4] : memref<1x128xf32, #tpu.memory_space<vmem>>, vector<1x128xf32>
    %4 = vector.broadcast %3 : vector<1x128xf32> to vector<8x128xf32>
    %5 = arith.addf %2, %4 : vector<8x128xf32>
    %cst_5 = arith.constant 0.000000e+00 : f32
    %6 = vector.broadcast %cst_5 : f32 to vector<8x128xf32>
    %7 = arith.maximumf %5, %6 : vector<8x128xf32>
    %c0_6 = arith.constant 0 : index
    %c0_7 = arith.constant 0 : index
    %8 = vector.load %arg4[%c0_6, %c0_7] : memref<128x128xf32, #tpu.memory_space<vmem>>, vector<128x128xf32>
    %cst_8 = arith.constant dense<0.000000e+00> : vector<8x128xf32>
    %9 = tpu.matmul %7, %8, %cst_8 {dimension_numbers = #tpu.dot_dimension_numbers<[1], [0], [0], [1], [0, 0, 1, 1], [], []>} : vector<8x128xf32>, vector<128x128xf32>, vector<8x128xf32> -> vector<8x128xf32>
    %c0_9 = arith.constant 0 : index
    %c0_10 = arith.constant 0 : index
    %10 = vector.load %arg5[%c0_9, %c0_10] : memref<1x128xf32, #tpu.memory_space<vmem>>, vector<1x128xf32>
    %11 = vector.broadcast %10 : vector<1x128xf32> to vector<8x128xf32>
    %12 = arith.addf %9, %11 : vector<8x128xf32>
    %c0_11 = arith.constant 0 : index
    %c0_12 = arith.constant 0 : index
    %13 = vector.load %arg9[%c0_11, %c0_12] : memref<8x128xf32, #tpu.memory_space<vmem>>, vector<8x128xf32>
    tpu.vector_store %arg9[%c0_11, %c0_12], %12 {strides = array<i32>} : memref<8x128xf32, #tpu.memory_space<vmem>>, vector<8x128xf32>,
    %c0_13 = arith.constant 0 : index
    %c0_14 = arith.constant 0 : index
    %14 = vector.load %arg6[%c0_13, %c0_14] : memref<8x128xf32, #tpu.memory_space<vmem>>, vector<8x128xf32>
    %c0_15 = arith.constant 0 : index
    %c0_16 = arith.constant 0 : index
    %15 = vector.load %arg7[%c0_15, %c0_16] : memref<1x128xf32, #tpu.memory_space<vmem>>, vector<1x128xf32>
    %16 = vector.broadcast %15 : vector<1x128xf32> to vector<8x128xf32>
    %17 = arith.subf %14, %16 : vector<8x128xf32>
    %c0_17 = arith.constant 0 : index
    %c0_18 = arith.constant 0 : index
    %18 = vector.load %arg8[%c0_17, %c0_18] : memref<1x128xf32, #tpu.memory_space<vmem>>, vector<1x128xf32>
    %19 = vector.broadcast %18 : vector<1x128xf32> to vector<8x128xf32>
    %20 = arith.mulf %17, %19 : vector<8x128xf32>
    %21 = arith.cmpf one, %20, %20 : vector<8x128xf32>
    %22 = arith.subf %12, %20 : vector<8x128xf32>
    %cst_19 = arith.constant 0.000000e+00 : f32
    %23 = vector.broadcast %cst_19 : f32 to vector<8x128xf32>
    %24 = arith.select %21, %23, %22 : vector<8x128xi1>, vector<8x128xf32>
    %25 = arith.mulf %24, %24 : vector<8x128xf32>
    %26 = vector.shape_cast %25 : vector<8x128xf32> to vector<1x8x128xf32>
    %cst_20 = arith.constant dense<0.000000e+00> : vector<1xf32>
    %27 = vector.multi_reduction <add>, %26, %cst_20 [1, 2] : vector<1x8x128xf32> to vector<1xf32>
    %28 = vector.shape_cast %27 : vector<1xf32> to vector<1x1x1xf32>
    %29 = vector.extract %28[0, 0, 0] : f32 from vector<1x1x1xf32>
    %30 = vector.broadcast %29 : f32 to vector<1x8x128xf32>
    %c0_21 = arith.constant 0 : index
    %c0_22 = arith.constant 0 : index
    %c0_23 = arith.constant 0 : index
    %31 = vector.load %arg10[%c0_21, %c0_22, %c0_23] : memref<1x8x128xf32, #tpu.memory_space<vmem>>, vector<1x8x128xf32>
    tpu.vector_store %arg10[%c0_21, %c0_22, %c0_23], %30 {strides = array<i32>} : memref<1x8x128xf32, #tpu.memory_space<vmem>>, vector<1x8x128xf32>,
    return
  }
  func.func @transform_0(%arg0: i32) -> (i32, i32) {
    %c0_i32 = arith.constant 0 : i32
    %c0_i32_0 = arith.constant 0 : i32
    return %arg0, %c0_i32 : i32, i32
  }
  func.func @transform_1(%arg0: i32) -> (i32, i32) {
    %c0_i32 = arith.constant 0 : i32
    %c0_i32_0 = arith.constant 0 : i32
    %c0_i32_1 = arith.constant 0 : i32
    return %c0_i32, %c0_i32_0 : i32, i32
  }
  func.func @transform_2(%arg0: i32) -> (i32, i32) {
    %c0_i32 = arith.constant 0 : i32
    %c0_i32_0 = arith.constant 0 : i32
    %c0_i32_1 = arith.constant 0 : i32
    return %c0_i32, %c0_i32_0 : i32, i32
  }
  func.func @transform_3(%arg0: i32) -> (i32, i32) {
    %c0_i32 = arith.constant 0 : i32
    %c0_i32_0 = arith.constant 0 : i32
    %c0_i32_1 = arith.constant 0 : i32
    return %c0_i32, %c0_i32_0 : i32, i32
  }
  func.func @transform_4(%arg0: i32) -> (i32, i32) {
    %c0_i32 = arith.constant 0 : i32
    %c0_i32_0 = arith.constant 0 : i32
    %c0_i32_1 = arith.constant 0 : i32
    return %c0_i32, %c0_i32_0 : i32, i32
  }
  func.func @transform_5(%arg0: i32) -> (i32, i32) {
    %c0_i32 = arith.constant 0 : i32
    %c0_i32_0 = arith.constant 0 : i32
    return %arg0, %c0_i32 : i32, i32
  }
  func.func @transform_6(%arg0: i32) -> (i32, i32) {
    %c0_i32 = arith.constant 0 : i32
    %c0_i32_0 = arith.constant 0 : i32
    %c0_i32_1 = arith.constant 0 : i32
    return %c0_i32, %c0_i32_0 : i32, i32
  }
  func.func @transform_7(%arg0: i32) -> (i32, i32) {
    %c0_i32 = arith.constant 0 : i32
    %c0_i32_0 = arith.constant 0 : i32
    %c0_i32_1 = arith.constant 0 : i32
    return %c0_i32, %c0_i32_0 : i32, i32
  }
  func.func @transform_8(%arg0: i32) -> (i32, i32) {
    %c0_i32 = arith.constant 0 : i32
    %c0_i32_0 = arith.constant 0 : i32
    return %arg0, %c0_i32 : i32, i32
  }
  func.func @transform_9(%arg0: i32) -> (i32, i32, i32) {
    %c0_i32 = arith.constant 0 : i32
    %c0_i32_0 = arith.constant 0 : i32
    %c0_i32_1 = arith.constant 0 : i32
    return %arg0, %c0_i32, %c0_i32_0 : i32, i32, i32
  }
}

</mosaic_0001>

<llo_original>
// kernel: tpu_custom_call.1
$region0: #{tpu_custom_call.1}
  #allocation0 [shape = 'u32[]', space=smem, size = 0x4, offset = 0x4, fixed_abs, tag = 'smem constant byte address 0x4 - core index']
  #allocation1 [shape = 'u32[144,128]{1,0:T(1,128)}', space=vmem, size = 0x12000, scoped, tag = 'internal scratch']
  %s0 = inlined_call_operand.hbm [shape: f32[8,128], index: 0, kind: input, shape index: {}]
  %s1 = inlined_call_operand.hbm [shape: f32[128,128], index: 1, kind: input, shape index: {}]
  %s2 = inlined_call_operand.vmem [shape: f32[1,128], index: 2, kind: input, shape index: {}]
  %s3 = inlined_call_operand.hbm [shape: f32[128,128], index: 3, kind: input, shape index: {}]
  %s4 = inlined_call_operand.vmem [shape: f32[1,128], index: 4, kind: input, shape index: {}]
  %s5 = inlined_call_operand.vmem [shape: f32[8,128], index: 5, kind: input, shape index: {}]
  %s6 = inlined_call_operand.vmem [shape: f32[1,128], index: 6, kind: input, shape index: {}]
  %s7 = inlined_call_operand.vmem [shape: f32[1,128], index: 7, kind: input, shape index: {}]
  %s8 = inlined_call_operand.hbm [shape: f32[8,128], index: 8, kind: output, shape index: {0}]
  %s9 = inlined_call_operand.hbm [shape: f32[1,8,128], index: 9, kind: output, shape index: {1}]
  %10 = xla_tuple %s8, %s9
  %s11 = sld [smem:[#allocation0]]
  $region62: #{tpu_custom_call.1} parent=0
    _
  %s13 = ssub.s32 1, %s11
  %s14 = scalar_select 0, %s13, %s11
  $region1: #{tpu_custom_call.1} parent=0
    #allocation2 [shape = 'u8[4096]{0}', space=vmem, size = 0x1000, scoped, tag = 'input window, operand 0, single buffered']
    #allocation3 [shape = 's32[1]{0}', space=sflag, size = 0x4, scoped, tag = 'scoped memory for tpu_custom_call.1']
    #allocation4 [shape = 's32[1]{0}', space=sflag, size = 0x4, scoped, tag = 'scoped memory for tpu_custom_call.1']
    #allocation5 [shape = 'u8[65536]{0}', space=vmem, size = 0x10000, scoped, tag = 'input window, operand 1, single buffered']
    #allocation6 [shape = 's32[1]{0}', space=sflag, size = 0x4, scoped, tag = 'scoped memory for tpu_custom_call.1']
    #allocation7 [shape = 'u8[65536]{0}', space=vmem, size = 0x10000, scoped, tag = 'input window, operand 3, single buffered']
    #allocation8 [shape = 'u8[4096]{0}', space=vmem, size = 0x1000, scoped, tag = 'output window, operand 0, single buffered']
    #allocation9 [shape = 'u8[4096]{0}', space=vmem, size = 0x1000, scoped, tag = 'output window, operand 1, single buffered']
    #allocation10 [shape = 's32[1]{0}', space=sflag, size = 0x4, scoped, tag = 'scoped memory for tpu_custom_call.1']
    %15 = vsyncpa [#allocation3], 0
    %16 = vsyncpa [#allocation6], 0
    %17 = vsyncpa [#allocation4], 0
    %18 = vsyncpa [#allocation10], 0
    // Predicated region
    $region2: #{tpu_custom_call.1} parent=1 // pred_check
      _
    $region3: #{tpu_custom_call.1} parent=1 // pred_check_branch
      %20 = sbr.rel (0) target = $region5
    $region4: #{tpu_custom_call.1} parent=1 // pred_region
      %s22 = ssub.s32 128, 128
      %23 = vsyncadd [#allocation3], %s22
      %s25 = sshll.u32 [#allocation2], 4
      %s26 = int_to_ptr.vmem [resolvable:$true] %s25
      %28 = dma.hbm_to_vmem [thread:$0]  %s0, 128, %s26, [#allocation3]
    $region5: #{tpu_custom_call.1} parent=1 // pred_fallthru
      _
    // Predicated region
    $region6: #{tpu_custom_call.1} parent=1 // pred_check
      _
    $region7: #{tpu_custom_call.1} parent=1 // pred_check_branch
      %30 = sbr.rel (0) target = $region9
    $region8: #{tpu_custom_call.1} parent=1 // pred_region
      %s32 = ssub.s32 2048, 2048
      %33 = vsyncadd [#allocation6], %s32
      %s34 = sshll.u32 [#allocation5], 4
      %s35 = int_to_ptr.vmem [resolvable:$true] %s34
      %40 = dma.hbm_to_vmem [thread:$0]  %s1, 2048, %s35, [#allocation6], 128, 128, 8
    $region9: #{tpu_custom_call.1} parent=1 // pred_fallthru
      _
    // Predicated region
    $region10: #{tpu_custom_call.1} parent=1 // pred_check
      _
    $region11: #{tpu_custom_call.1} parent=1 // pred_check_branch
      %42 = sbr.rel (0) target = $region13
    $region12: #{tpu_custom_call.1} parent=1 // pred_region
      _
    $region13: #{tpu_custom_call.1} parent=1 // pred_fallthru
      _
    // Predicated region
    $region14: #{tpu_custom_call.1} parent=1 // pred_check
      _
    $region15: #{tpu_custom_call.1} parent=1 // pred_check_branch
      %44 = sbr.rel (0) target = $region17
    $region16: #{tpu_custom_call.1} parent=1 // pred_region
      %s46 = ssub.s32 2048, 2048
      %47 = vsyncadd [#allocation6], %s46
      %s48 = sshll.u32 [#allocation7], 4
      %s49 = int_to_ptr.vmem [resolvable:$true] %s48
      %54 = dma.hbm_to_vmem [thread:$0]  %s3, 2048, %s49, [#allocation6], 128, 128, 8
    $region17: #{tpu_custom_call.1} parent=1 // pred_fallthru
      _
    // Predicated region
    $region18: #{tpu_custom_call.1} parent=1 // pred_check
      _
    $region19: #{tpu_custom_call.1} parent=1 // pred_check_branch
      %56 = sbr.rel (0) target = $region21
    $region20: #{tpu_custom_call.1} parent=1 // pred_region
      _
    $region21: #{tpu_custom_call.1} parent=1 // pred_fallthru
      _
    // Predicated region
    $region22: #{tpu_custom_call.1} parent=1 // pred_check
      _
    $region23: #{tpu_custom_call.1} parent=1 // pred_check_branch
      %58 = sbr.rel (0) target = $region25
    $region24: #{tpu_custom_call.1} parent=1 // pred_region
      _
    $region25: #{tpu_custom_call.1} parent=1 // pred_fallthru
      _
    // Predicated region
    $region26: #{tpu_custom_call.1} parent=1 // pred_check
      _
    $region27: #{tpu_custom_call.1} parent=1 // pred_check_branch
      %60 = sbr.rel (0) target = $region29
    $region28: #{tpu_custom_call.1} parent=1 // pred_region
      _
    $region29: #{tpu_custom_call.1} parent=1 // pred_fallthru
      _
    // Predicated region
    $region30: #{tpu_custom_call.1} parent=1 // pred_check
      _
    $region31: #{tpu_custom_call.1} parent=1 // pred_check_branch
      %62 = sbr.rel (0) target = $region33
    $region32: #{tpu_custom_call.1} parent=1 // pred_region
      _
    $region33: #{tpu_custom_call.1} parent=1 // pred_fallthru
      _
    // Predicated region
    $region34: #{tpu_custom_call.1} parent=1 // pred_check
      _
    $region35: #{tpu_custom_call.1} parent=1 // pred_check_branch
      %64 = sbr.rel (0) target = $region37
    $region36: #{tpu_custom_call.1} parent=1 // pred_region
      %65 = dma.done [#allocation3], 128
    $region37: #{tpu_custom_call.1} parent=1 // pred_fallthru
      _
    // Predicated region
    $region38: #{tpu_custom_call.1} parent=1 // pred_check
      _
    $region39: #{tpu_custom_call.1} parent=1 // pred_check_branch
      %67 = sbr.rel (0) target = $region41
    $region40: #{tpu_custom_call.1} parent=1 // pred_region
      %68 = dma.done [#allocation6], 2048
    $region41: #{tpu_custom_call.1} parent=1 // pred_fallthru
      _
    // Predicated region
    $region42: #{tpu_custom_call.1} parent=1 // pred_check
      _
    $region43: #{tpu_custom_call.1} parent=1 // pred_check_branch
      %70 = sbr.rel (0) target = $region45
    $region44: #{tpu_custom_call.1} parent=1 // pred_region
      %71 = dma.done [#allocation6], 2048
    $region45: #{tpu_custom_call.1} parent=1 // pred_fallthru
      _
    %v72 = vld [vmem:[#allocation2] sm:$0xff]
    %v73 = vld [vmem:[#allocation5] sm:$0xff]
    %v74 = vld [vmem:[#allocation5 + $0x8] sm:$0xff]
    %v75 = vld [vmem:[#allocation5 + $0x10] sm:$0xff]
    %v76 = vld [vmem:[#allocation5 + $0x18] sm:$0xff]
    %v77 = vld [vmem:[#allocation5 + $0x20] sm:$0xff]
    %v78 = vld [vmem:[#allocation5 + $0x28] sm:$0xff]
    %v79 = vld [vmem:[#allocation5 + $0x30] sm:$0xff]
    %v80 = vld [vmem:[#allocation5 + $0x38] sm:$0xff]
    %v81 = vld [vmem:[#allocation5 + $0x40] sm:$0xff]
    %v82 = vld [vmem:[#allocation5 + $0x48] sm:$0xff]
    %v83 = vld [vmem:[#allocation5 + $0x50] sm:$0xff]
    %v84 = vld [vmem:[#allocation5 + $0x58] sm:$0xff]
    %v85 = vld [vmem:[#allocation5 + $0x60] sm:$0xff]
    %v86 = vld [vmem:[#allocation5 + $0x68] sm:$0xff]
    %v87 = vld [vmem:[#allocation5 + $0x70] sm:$0xff]
    %v88 = vld [vmem:[#allocation5 + $0x78] sm:$0xff]
    %v89 = vld [vmem:[%s2] sm:$0x1]
    %v91 = vlaneseq
    %v92 = vshrl.u32 %v91, 7
    %v93 = vsub.s32 0, %v92
    %v94 = vrot.slane %v89, %v93
    %96 = vmatprep.subr.mxu0 0.0
    %97 = vmatpush1.msra.mxu0 %v73
    %98 = vmatprep.subr.mxu0 0.0
    %99 = vmatpush1.msra.mxu0 %v74
    %100 = vmatprep.subr.mxu0 0.0
    %101 = vmatpush1.msra.mxu0 %v75
    %102 = vmatprep.subr.mxu0 0.0
    %103 = vmatpush1.msra.mxu0 %v76
    %104 = vmatprep.subr.mxu0 0.0
    %105 = vmatpush1.msra.mxu0 %v77
    %106 = vmatprep.subr.mxu0 0.0
    %107 = vmatpush1.msra.mxu0 %v78
    %108 = vmatprep.subr.mxu0 0.0
    %109 = vmatpush1.msra.mxu0 %v79
    %110 = vmatprep.subr.mxu0 0.0
    %111 = vmatpush1.msra.mxu0 %v80
    %112 = vmatprep.subr.mxu0 0.0
    %113 = vmatpush1.msra.mxu0 %v81
    %114 = vmatprep.subr.mxu0 0.0
    %115 = vmatpush1.msra.mxu0 %v82
    %116 = vmatprep.subr.mxu0 0.0
    %117 = vmatpush1.msra.mxu0 %v83
    %118 = vmatprep.subr.mxu0 0.0
    %119 = vmatpush1.msra.mxu0 %v84
    %120 = vmatprep.subr.mxu0 0.0
    %121 = vmatpush1.msra.mxu0 %v85
    %122 = vmatprep.subr.mxu0 0.0
    %123 = vmatpush1.msra.mxu0 %v86
    %124 = vmatprep.subr.mxu0 0.0
    %125 = vmatpush1.msra.mxu0 %v87
    %126 = vmatprep.subr.mxu0 0.0
    %127 = vmatpush1.msra.mxu0 %v88
    %128 = vmatprep.subr.mxu0 0.0
    %129 = vmatpush1.msra.mxu0 0.0
    %130 = vmatprep.subr.mxu0 0.0
    %131 = vmatpush1.msra.mxu0 0.0
    %132 = vmatprep.subr.mxu0 0.0
    %133 = vmatpush1.msra.mxu0 0.0
    %134 = vmatprep.subr.mxu0 0.0
    %135 = vmatpush1.msra.mxu0 0.0
    %136 = vmatprep.subr.mxu0 0.0
    %137 = vmatpush1.msra.mxu0 0.0
    %138 = vmatprep.subr.mxu0 0.0
    %139 = vmatpush1.msra.mxu0 0.0
    %140 = vmatprep.subr.mxu0 0.0
    %141 = vmatpush1.msra.mxu0 0.0
    %142 = vmatprep.subr.mxu0 0.0
    %143 = vmatpush1.msra.mxu0 0.0
    %144 = vmatprep.subr.mxu0 0.0
    %145 = vmatpush1.msra.mxu0 0.0
    %146 = vmatprep.subr.mxu0 0.0
    %147 = vmatpush1.msra.mxu0 0.0
    %148 = vmatprep.subr.mxu0 0.0
    %149 = vmatpush1.msra.mxu0 0.0
    %150 = vmatprep.subr.mxu0 0.0
    %151 = vmatpush1.msra.mxu0 0.0
    %152 = vmatprep.subr.mxu0 0.0
    %153 = vmatpush1.msra.mxu0 0.0
    %154 = vmatprep.subr.mxu0 0.0
    %155 = vmatpush1.msra.mxu0 0.0
    %156 = vmatprep.subr.mxu0 0.0
    %157 = vmatpush1.msra.mxu0 0.0
    %158 = vmatprep.subr.mxu0 0.0
    %159 = vmatpush1.msra.mxu0 0.0
    %160 = vmatprep.mubr.f32.mxu0 0.0
    %161 = vmatmul.mubr.f32.gmra.mrb[0].mxu0 %v72
    %v162 = vpop.f32.mrb[0].mxu0
    %v163 = vadd.f32 %v94, %v162
    %v164 = vpop.f32.mrb[0].mxu0
    %165 = vdwg.mxu0
    %v166 = vmax.f32 %v163, 0.0
    %v167 = vld [vmem:[#allocation7] sm:$0xff]
    %v168 = vld [vmem:[#allocation7 + $0x8] sm:$0xff]
    %v169 = vld [vmem:[#allocation7 + $0x10] sm:$0xff]
    %v170 = vld [vmem:[#allocation7 + $0x18] sm:$0xff]
    %v171 = vld [vmem:[#allocation7 + $0x20] sm:$0xff]
    %v172 = vld [vmem:[#allocation7 + $0x28] sm:$0xff]
    %v173 = vld [vmem:[#allocation7 + $0x30] sm:$0xff]
    %v174 = vld [vmem:[#allocation7 + $0x38] sm:$0xff]
    %v175 = vld [vmem:[#allocation7 + $0x40] sm:$0xff]
    %v176 = vld [vmem:[#allocation7 + $0x48] sm:$0xff]
    %v177 = vld [vmem:[#allocation7 + $0x50] sm:$0xff]
    %v178 = vld [vmem:[#allocation7 + $0x58] sm:$0xff]
    %v179 = vld [vmem:[#allocation7 + $0x60] sm:$0xff]
    %v180 = vld [vmem:[#allocation7 + $0x68] sm:$0xff]
    %v181 = vld [vmem:[#allocation7 + $0x70] sm:$0xff]
    %v182 = vld [vmem:[#allocation7 + $0x78] sm:$0xff]
    %v183 = vld [vmem:[%s4] sm:$0x1]
    %v185 = vlaneseq
    %v186 = vshrl.u32 %v185, 7
    %v187 = vsub.s32 0, %v186
    %v188 = vrot.slane %v183, %v187
    %190 = vmatprep.subr.mxu0 0.0
    %191 = vmatpush1.msra.mxu0 %v167
    %192 = vmatprep.subr.mxu0 0.0
    %193 = vmatpush1.msra.mxu0 %v168
    %194 = vmatprep.subr.mxu0 0.0
    %195 = vmatpush1.msra.mxu0 %v169
    %196 = vmatprep.subr.mxu0 0.0
    %197 = vmatpush1.msra.mxu0 %v170
    %198 = vmatprep.subr.mxu0 0.0
    %199 = vmatpush1.msra.mxu0 %v171
    %200 = vmatprep.subr.mxu0 0.0
    %201 = vmatpush1.msra.mxu0 %v172
    %202 = vmatprep.subr.mxu0 0.0
    %203 = vmatpush1.msra.mxu0 %v173
    %204 = vmatprep.subr.mxu0 0.0
    %205 = vmatpush1.msra.mxu0 %v174
    %206 = vmatprep.subr.mxu0 0.0
    %207 = vmatpush1.msra.mxu0 %v175
    %208 = vmatprep.subr.mxu0 0.0
    %209 = vmatpush1.msra.mxu0 %v176
    %210 = vmatprep.subr.mxu0 0.0
    %211 = vmatpush1.msra.mxu0 %v177
    %212 = vmatprep.subr.mxu0 0.0
    %213 = vmatpush1.msra.mxu0 %v178
    %214 = vmatprep.subr.mxu0 0.0
    %215 = vmatpush1.msra.mxu0 %v179
    %216 = vmatprep.subr.mxu0 0.0
    %217 = vmatpush1.msra.mxu0 %v180
    %218 = vmatprep.subr.mxu0 0.0
    %219 = vmatpush1.msra.mxu0 %v181
    %220 = vmatprep.subr.mxu0 0.0
    %221 = vmatpush1.msra.mxu0 %v182
    %222 = vmatprep.subr.mxu0 0.0
    %223 = vmatpush1.msra.mxu0 0.0
    %224 = vmatprep.subr.mxu0 0.0
    %225 = vmatpush1.msra.mxu0 0.0
    %226 = vmatprep.subr.mxu0 0.0
    %227 = vmatpush1.msra.mxu0 0.0
    %228 = vmatprep.subr.mxu0 0.0
    %229 = vmatpush1.msra.mxu0 0.0
    %230 = vmatprep.subr.mxu0 0.0
    %231 = vmatpush1.msra.mxu0 0.0
    %232 = vmatprep.subr.mxu0 0.0
    %233 = vmatpush1.msra.mxu0 0.0
    %234 = vmatprep.subr.mxu0 0.0
    %235 = vmatpush1.msra.mxu0 0.0
    %236 = vmatprep.subr.mxu0 0.0
    %237 = vmatpush1.msra.mxu0 0.0
    %238 = vmatprep.subr.mxu0 0.0
    %239 = vmatpush1.msra.mxu0 0.0
    %240 = vmatprep.subr.mxu0 0.0
    %241 = vmatpush1.msra.mxu0 0.0
    %242 = vmatprep.subr.mxu0 0.0
    %243 = vmatpush1.msra.mxu0 0.0
    %244 = vmatprep.subr.mxu0 0.0
    %245 = vmatpush1.msra.mxu0 0.0
    %246 = vmatprep.subr.mxu0 0.0
    %247 = vmatpush1.msra.mxu0 0.0
    %248 = vmatprep.subr.mxu0 0.0
    %249 = vmatpush1.msra.mxu0 0.0
    %250 = vmatprep.subr.mxu0 0.0
    %251 = vmatpush1.msra.mxu0 0.0
    %252 = vmatprep.subr.mxu0 0.0
    %253 = vmatpush1.msra.mxu0 0.0
    %254 = vmatprep.mubr.f32.mxu0 0.0
    %255 = vmatmul.mubr.f32.gmra.mrb[0].mxu0 %v166
    %v256 = vpop.f32.mrb[0].mxu0
    %v257 = vadd.f32 %v188, %v256
    %v258 = vpop.f32.mrb[0].mxu0
    %259 = vdwg.mxu0
    %260 = vst [vmem:[#allocation8] sm:$0xff] %v257
    %v261 = vld [vmem:[%s5] sm:$0xff]
    %v262 = vld [vmem:[%s6] sm:$0x1]
    %v264 = vlaneseq
    %v265 = vshrl.u32 %v264, 7
    %v266 = vsub.s32 0, %v265
    %v267 = vrot.slane %v262, %v266
    %v269 = vsub.f32 %v261, %v267
    %v270 = vld [vmem:[%s7] sm:$0x1]
    %v272 = vlaneseq
    %v273 = vshrl.u32 %v272, 7
    %v274 = vsub.s32 0, %v273
    %v275 = vrot.slane %v270, %v274
    %v277 = vmul.f32 %v269, %v275
    %vm278 = vcmp.ne.f32.partialorder %v277, %v277
    %v279 = vsub.f32 %v257, %v277
    %v280 = vsel %vm278, 0.0, %v279
    %v281 = vmul.f32 %v280, %v280
    %282 = vadd.xlane.f32.xlu0 %v281
    %v283 = vpop.xlane.xlu0 %282
    %v284 = vrot.slane %v283, 4
    %v285 = vadd.f32 %v283, %v284
    %v286 = vrot.slane %v285, 2
    %v287 = vadd.f32 %v285, %v286
    %v288 = vrot.slane %v287, 1
    %v289 = vadd.f32 %v287, %v288
    %s290 = vtos %v289
    %v291 = vstv %s290
    %292 = vst [vmem:[#allocation9] sm:$0xff] %v291
    // Predicated region
    $region46: #{tpu_custom_call.1} parent=1 // pred_check
      _
    $region47: #{tpu_custom_call.1} parent=1 // pred_check_branch
      %294 = sbr.rel (0) target = $region49
    $region48: #{tpu_custom_call.1} parent=1 // pred_region
      %s296 = ssub.s32 128, 128
      %297 = vsyncadd [#allocation4], %s296
      %s299 = sshll.u32 [#allocation8], 4
      %s300 = int_to_ptr.vmem [resolvable:$true] %s299
      %302 = dma.vmem_to_hbm [thread:$0]  %s300, 128, %s8, [#allocation4]
    $region49: #{tpu_custom_call.1} parent=1 // pred_fallthru
      _
    // Predicated region
    $region50: #{tpu_custom_call.1} parent=1 // pred_check
      _
    $region51: #{tpu_custom_call.1} parent=1 // pred_check_branch
      %304 = sbr.rel (0) target = $region53
    $region52: #{tpu_custom_call.1} parent=1 // pred_region
      %s306 = ssub.s32 128, 128
      %307 = vsyncadd [#allocation10], %s306
      %s309 = sshll.u32 [#allocation9], 4
      %s310 = int_to_ptr.vmem [resolvable:$true] %s309
      %312 = dma.vmem_to_hbm [thread:$0]  %s310, 128, %s9, [#allocation10]
    $region53: #{tpu_custom_call.1} parent=1 // pred_fallthru
      _
    // Predicated region
    $region54: #{tpu_custom_call.1} parent=1 // pred_check
      _
    $region55: #{tpu_custom_call.1} parent=1 // pred_check_branch
      %314 = sbr.rel (0) target = $region57
    $region56: #{tpu_custom_call.1} parent=1 // pred_region
      %315 = dma.done [#allocation4], 128
    $region57: #{tpu_custom_call.1} parent=1 // pred_fallthru
      _
    // Predicated region
    $region58: #{tpu_custom_call.1} parent=1 // pred_check
      _
    $region59: #{tpu_custom_call.1} parent=1 // pred_check_branch
      %317 = sbr.rel (0) target = $region61
    $region60: #{tpu_custom_call.1} parent=1 // pred_region
      %318 = dma.done [#allocation10], 128
    $region61: #{tpu_custom_call.1} parent=1 // pred_fallthru
      _
    %319 = vsyncpa [#allocation3], 1
    %320 = vsyncpa [#allocation6], 1
    %321 = vsyncpa [#allocation4], 1
    %322 = vsyncpa [#allocation10], 1

</llo_original>
